<compile_context>
chip_gen: v7x
topology: tpu7x:2x2x1
jax: 0.10.0
libtpu: 0.0.40
codegen_flags: <defaults>
</compile_context>

<pallas_src>
import math

import jax
import jax.numpy as jnp
from jax.experimental import pallas as pl
from jax.experimental.pallas import tpu as pltpu

N_IN = 80       # decoder input features
N_H1 = 180      # hidden_layer_1 output features
N_NODES = 248   # hidden_layer_2 output features == GCN node count

_LANES = 256    # padded lane width for hidden / output dims (multiple of 128)

# packed weight slab layout (rows, all offsets multiples of 16 for bf16 tiling)
_W1_OFF = 0                 # rows   0..79  : W1 (80, 256)  cols 0:180 valid
_B1_ROW = 80                # row   80      : b1
_W2_OFF = 96                # rows  96..351 : W2 padded to (256, 256), rows 0:180 valid
_B2_ROW = _W2_OFF + _LANES  # row  352      : b2
_M_OFF = 368                # rows 368..623 : w_gcn * A_hat^T padded to (256, 256)
_BG_ROW = _M_OFF + _LANES   # row  624      : gcn bias broadcast row
_SLAB_ROWS = 640            # total rows (multiple of 16)


def _decoder_kernel(x_ref, w_ref, out_ref):
    """Fused decoder forward for one (TB, 80) batch tile.

    x_ref : (TB, 80)   bf16
    w_ref : (640, 256) bf16 packed weight slab (see layout constants above)
    out_ref: (TB, 256) f32 (cols 248:256 are padding, sliced off in wrapper)
    """
    x = x_ref[...]

    # ---- Linear(80, 180) + tanh (padded to 256 lanes; pad cols stay 0) ----
    w1 = w_ref[_W1_OFF:_W1_OFF + N_IN, :]
    b1 = w_ref[_B1_ROW:_B1_ROW + 1, :].astype(jnp.float32)
    h = jnp.tanh(jnp.dot(x, w1, preferred_element_type=jnp.float32) + b1)
    # TODO(synk): dropout (p=0.2) layers are identity here (inference mode);
    # training-mode stochastic masking is not implemented.
    h = h.astype(jnp.bfloat16)

    # ---- Linear(180, 248) + tanh (K padded to 256, pad rows of W2 are 0) ----
    w2 = w_ref[_W2_OFF:_W2_OFF + _LANES, :]
    b2 = w_ref[_B2_ROW:_B2_ROW + 1, :].astype(jnp.float32)
    h = jnp.tanh(jnp.dot(h, w2, preferred_element_type=jnp.float32) + b2)
    h = h.astype(jnp.bfloat16)

    # ---- dense 1x1 GCNConv: h @ (w_gcn * A_hat^T) + b_gcn ----
    m = w_ref[_M_OFF:_M_OFF + _LANES, :]
    bg = w_ref[_BG_ROW:_BG_ROW + 1, :].astype(jnp.float32)
    out = jnp.dot(h, m, preferred_element_type=jnp.float32) + bg
    out_ref[...] = out.astype(out_ref.dtype)


def gcn_norm_dense(edge_index, num_nodes):
    """Dense GCN normalization: A_hat = D^{-1/2} (A + I) D^{-1/2}.

    edge_index: (2, E) int array, row 0 = source node, row 1 = target node.
    A[i, j] = 1 for each edge j -> i (message from source j to target i).
    """
    src = edge_index[0]
    dst = edge_index[1]
    a = jnp.zeros((num_nodes, num_nodes), jnp.float32)
    a = a.at[dst, src].set(1.0)
    a = a + jnp.eye(num_nodes, dtype=jnp.float32)        # self loops
    deg = jnp.sum(a, axis=1)                              # >= 1 always
    dinv = jax.lax.rsqrt(deg)
    return a * dinv[:, None] * dinv[None, :]


def pack_params(params, edge_index):
    """Pack the 7 weight/bias tensors into one lane-padded bf16 slab.

    Pure preprocessing (dense adjacency build + normalization); callers that
    run many forwards should call this once and reuse the returned slab.
    """
    slab = jnp.zeros((_SLAB_ROWS, _LANES), jnp.float32)
    slab = slab.at[_W1_OFF:_W1_OFF + N_IN, :N_H1].set(params["w1"])
    slab = slab.at[_B1_ROW, :N_H1].set(params["b1"])
    slab = slab.at[_W2_OFF:_W2_OFF + N_H1, :N_NODES].set(params["w2"])
    slab = slab.at[_B2_ROW, :N_NODES].set(params["b2"])

    a_hat = gcn_norm_dense(edge_index, N_NODES)
    m = (a_hat.T * params["gcn_w"]).astype(jnp.float32)
    slab = slab.at[_M_OFF:_M_OFF + N_NODES, :N_NODES].set(m)
    slab = slab.at[_BG_ROW, :N_NODES].set(
        jnp.full((N_NODES,), params["gcn_b"], jnp.float32))
    return slab.astype(jnp.bfloat16)


def _round_up(v, m):
    return ((v + m - 1) // m) * m


def decoder_forward(x, slab, *, block_rows=2048):
    """x: (..., 80) float. slab: packed bf16 weights. Returns (..., 248) f32."""
    lead = x.shape[:-1]
    assert x.shape[-1] == N_IN
    B = int(math.prod(lead)) if lead else 1
    x2 = x.reshape(B, N_IN).astype(jnp.bfloat16)

    # Batch tile: big enough to amortize the ~0.35us/step overhead, and chosen
    # so the grid has >= 2 steps whenever possible (v7x megacore + pipelining).
    # Per-step VMEM at tb=2048: ~4 MiB out (x2 bufs) + ~0.7 MiB x/slab bufs
    # + ~6 MiB intermediates -> well under 64 MiB (v7x) with the limit below.
    tb = min(_round_up(block_rows, 16), _round_up(pl.cdiv(B, 2), 16))
    tb = max(tb, 16)
    nb = pl.cdiv(B, tb)
    b_pad = nb * tb
    if b_pad != B:
        x2 = jnp.pad(x2, ((0, b_pad - B), (0, 0)))

    out = pl.pallas_call(
        _decoder_kernel,
        out_shape=jax.ShapeDtypeStruct((b_pad, _LANES), jnp.float32),
        grid=(nb,),
        in_specs=[
            pl.BlockSpec((tb, N_IN), lambda i: (i, 0)),
            # weight slab: constant index_map -> fetched once, VMEM-resident
            pl.BlockSpec((_SLAB_ROWS, _LANES), lambda i: (0, 0)),
        ],
        out_specs=pl.BlockSpec((tb, _LANES), lambda i: (i, 0)),
        compiler_params=pltpu.CompilerParams(
            dimension_semantics=("parallel",),
            vmem_limit_bytes=48 * 1024 * 1024),
    )(x2, slab)

    return out[:B, :N_NODES].reshape(*lead, N_NODES)


def gen_autoencoder_gcn_decoder_zone0(x, params, edge_index, *, block_rows=2048):
    """Full module forward. Packs params on every call; hoist pack_params to
    cache the slab when calling repeatedly."""
    slab = pack_params(params, edge_index)
    out = decoder_forward(x, slab, block_rows=block_rows)
    return {"x_input": x, "x_output": out}


def init_params(key):
    """Deterministic init (PyTorch-Linear-style uniform). W stored as (in, out)."""
    params = {}
    dims = [("w1", "b1", N_IN, N_H1), ("w2", "b2", N_H1, N_NODES)]
    for wn, bn, fan_in, fan_out in dims:
        key, kw, kb = jax.random.split(key, 3)
        bound = 1.0 / math.sqrt(fan_in)
        params[wn] = jax.random.uniform(kw, (fan_in, fan_out), jnp.float32,
                                        -bound, bound)
        params[bn] = jax.random.uniform(kb, (fan_out,), jnp.float32,
                                        -bound, bound)
    key, kw, kb = jax.random.split(key, 3)
    params["gcn_w"] = jax.random.uniform(kw, (), jnp.float32, -1.0, 1.0)
    params["gcn_b"] = jax.random.uniform(kb, (), jnp.float32, -0.1, 0.1)
    return params


def make_ring_edge_index(num_nodes=N_NODES):
    """Deterministic bidirectional ring graph over the 248 GCN nodes."""
    nodes = jnp.arange(num_nodes, dtype=jnp.int32)
    nxt = (nodes + 1) % num_nodes
    src = jnp.concatenate([nodes, nxt])
    dst = jnp.concatenate([nxt, nodes])
    return jnp.stack([src, dst])


def reference_forward(x, params, edge_index):
    """Pure-JAX f32 reference of the module forward (eval mode)."""
    hp = jax.lax.Precision.HIGHEST
    a_hat = gcn_norm_dense(edge_index, N_NODES)
    h = jnp.tanh(jnp.einsum("...i,ij->...j", x, params["w1"],
                            precision=hp) + params["b1"])
    h = jnp.tanh(jnp.einsum("...i,ij->...j", h, params["w2"],
                            precision=hp) + params["b2"])
    y = jnp.einsum("...j,ij->...i", h, a_hat,
                   precision=hp) * params["gcn_w"] + params["gcn_b"]
    return y


if __name__ == "__main__":
    key = jax.random.PRNGKey(0)
    k_x, k_p = jax.random.split(key)

    batch = 8
    x = jax.random.normal(k_x, (batch, 1, N_IN), jnp.float32)
    edge_index = make_ring_edge_index()
    params = init_params(k_p)

    result = gen_autoencoder_gcn_decoder_zone0(x, params, edge_index)
    out = result["x_output"]
    jax.block_until_ready(out)

    assert out.shape == (batch, 1, N_NODES)
    assert bool(jnp.all(jnp.isfinite(out)))

    ref = reference_forward(x, params, edge_index)
    max_err = float(jnp.max(jnp.abs(out - ref)))
    # bf16 matmul operands (f32 accumulation) vs f32-HIGHEST reference.
    assert max_err < 2e-2, f"max abs err too large: {max_err}"

    print("KERNEL_OK")
</pallas_src>

<mosaic_0001>
module attributes {stable_mosaic.version = 11 : i64} {
  func.func @_decoder_kernel(%arg0: i32, %arg1: memref<16x80xbf16, #tpu.memory_space<vmem>>, %arg2: memref<640x256xbf16, #tpu.memory_space<vmem>>, %arg3: memref<16x256xf32, #tpu.memory_space<vmem>>) attributes {dimension_semantics = [#tpu.dimension_semantics<parallel>], iteration_bounds = array<i64: 1>, scalar_prefetch = 0 : i64, scratch_operands = 0 : i64, tpu.core_type = #tpu.core_type<tc>, window_params = [{transform_indices = @transform_0, window_bounds = array<i64: 16, 80>}, {pipeline_mode = #tpu.pipeline_mode<synchronous>, transform_indices = @transform_1, window_bounds = array<i64: 640, 256>}, {transform_indices = @transform_2, window_bounds = array<i64: 16, 256>}]} {
    %c0 = arith.constant 0 : index
    %c0_0 = arith.constant 0 : index
    %0 = vector.load %arg1[%c0, %c0_0] : memref<16x80xbf16, #tpu.memory_space<vmem>>, vector<16x80xbf16>
    %c0_1 = arith.constant 0 : index
    %c0_2 = arith.constant 0 : index
    %1 = vector.load %arg2[%c0_1, %c0_2] : memref<640x256xbf16, #tpu.memory_space<vmem>>, vector<80x256xbf16>
    %c80 = arith.constant 80 : index
    %c0_3 = arith.constant 0 : index
    %2 = vector.load %arg2[%c80, %c0_3] : memref<640x256xbf16, #tpu.memory_space<vmem>>, vector<1x256xbf16>
    %3 = arith.extf %2 : vector<1x256xbf16> to vector<1x256xf32>
    %cst = arith.constant dense<0.000000e+00> : vector<16x256xf32>
    %4 = tpu.matmul %0, %1, %cst {dimension_numbers = #tpu.dot_dimension_numbers<[1], [0], [0], [1], [0, 0, 1, 1], [], []>} : vector<16x80xbf16>, vector<80x256xbf16>, vector<16x256xf32> -> vector<16x256xf32>
    %5 = vector.broadcast %3 : vector<1x256xf32> to vector<16x256xf32>
    %6 = arith.addf %4, %5 : vector<16x256xf32>
    %7 = math.tanh %6 : vector<16x256xf32>
    %8 = arith.truncf %7 : vector<16x256xf32> to vector<16x256xbf16>
    %c96 = arith.constant 96 : index
    %c0_4 = arith.constant 0 : index
    %9 = vector.load %arg2[%c96, %c0_4] : memref<640x256xbf16, #tpu.memory_space<vmem>>, vector<256x256xbf16>
    %c352 = arith.constant 352 : index
    %c0_5 = arith.constant 0 : index
    %10 = vector.load %arg2[%c352, %c0_5] : memref<640x256xbf16, #tpu.memory_space<vmem>>, vector<1x256xbf16>
    %11 = arith.extf %10 : vector<1x256xbf16> to vector<1x256xf32>
    %cst_6 = arith.constant dense<0.000000e+00> : vector<16x256xf32>
    %12 = tpu.matmul %8, %9, %cst_6 {dimension_numbers = #tpu.dot_dimension_numbers<[1], [0], [0], [1], [0, 0, 1, 1], [], []>} : vector<16x256xbf16>, vector<256x256xbf16>, vector<16x256xf32> -> vector<16x256xf32>
    %13 = vector.broadcast %11 : vector<1x256xf32> to vector<16x256xf32>
    %14 = arith.addf %12, %13 : vector<16x256xf32>
    %15 = math.tanh %14 : vector<16x256xf32>
    %16 = arith.truncf %15 : vector<16x256xf32> to vector<16x256xbf16>
    %c368 = arith.constant 368 : index
    %c0_7 = arith.constant 0 : index
    %17 = vector.load %arg2[%c368, %c0_7] : memref<640x256xbf16, #tpu.memory_space<vmem>>, vector<256x256xbf16>
    %c624 = arith.constant 624 : index
    %c0_8 = arith.constant 0 : index
    %18 = vector.load %arg2[%c624, %c0_8] : memref<640x256xbf16, #tpu.memory_space<vmem>>, vector<1x256xbf16>
    %19 = arith.extf %18 : vector<1x256xbf16> to vector<1x256xf32>
    %cst_9 = arith.constant dense<0.000000e+00> : vector<16x256xf32>
    %20 = tpu.matmul %16, %17, %cst_9 {dimension_numbers = #tpu.dot_dimension_numbers<[1], [0], [0], [1], [0, 0, 1, 1], [], []>} : vector<16x256xbf16>, vector<256x256xbf16>, vector<16x256xf32> -> vector<16x256xf32>
    %21 = vector.broadcast %19 : vector<1x256xf32> to vector<16x256xf32>
    %22 = arith.addf %20, %21 : vector<16x256xf32>
    %c0_10 = arith.constant 0 : index
    %c0_11 = arith.constant 0 : index
    %23 = vector.load %arg3[%c0_10, %c0_11] : memref<16x256xf32, #tpu.memory_space<vmem>>, vector<16x256xf32>
    tpu.vector_store %arg3[%c0_10, %c0_11], %22 {strides = array<i32>} : memref<16x256xf32, #tpu.memory_space<vmem>>, vector<16x256xf32>,
    return
  }
  func.func @transform_0(%arg0: i32) -> (i32, i32) {
    %c0_i32 = arith.constant 0 : i32
    %c0_i32_0 = arith.constant 0 : i32
    return %arg0, %c0_i32 : i32, i32
  }
  func.func @transform_1(%arg0: i32) -> (i32, i32) {
    %c0_i32 = arith.constant 0 : i32
    %c0_i32_0 = arith.constant 0 : i32
    %c0_i32_1 = arith.constant 0 : i32
    return %c0_i32, %c0_i32_0 : i32, i32
  }
  func.func @transform_2(%arg0: i32) -> (i32, i32) {
    %c0_i32 = arith.constant 0 : i32
    %c0_i32_0 = arith.constant 0 : i32
    return %arg0, %c0_i32 : i32, i32
  }
}

</mosaic_0001>

<llo_original>
// kernel: tpu_custom_call.1
$region0: #{tpu_custom_call.1}
  #allocation0 [shape = 'u32[]', space=smem, size = 0x4, offset = 0x4, fixed_abs, tag = 'smem constant byte address 0x4 - core index']
  #allocation1 [shape = 'u32[144,128]{1,0:T(1,128)}', space=vmem, size = 0x12000, scoped, tag = 'internal scratch']
  %s0 = inlined_call_operand.hbm [shape: bf16[16,80], index: 0, kind: input, shape index: {}]
  %s1 = inlined_call_operand.hbm [shape: bf16[640,256], index: 1, kind: input, shape index: {}]
  %s2 = inlined_call_operand.hbm [shape: f32[16,256], index: 2, kind: output, shape index: {}]
  %s3 = sld [smem:[#allocation0]]
  $region26: #{tpu_custom_call.1} parent=0
    _
  %s5 = ssub.s32 1, %s3
  %s6 = scalar_select 0, %s5, %s3
  $region1: #{tpu_custom_call.1} parent=0
    #allocation2 [shape = 'u8[4096]{0}', space=vmem, size = 0x1000, scoped, tag = 'input window, operand 0, single buffered']
    #allocation3 [shape = 's32[1]{0}', space=sflag, size = 0x4, scoped, tag = 'scoped memory for tpu_custom_call.1']
    #allocation4 [shape = 's32[1]{0}', space=sflag, size = 0x4, scoped, tag = 'scoped memory for tpu_custom_call.1']
    #allocation5 [shape = 'u8[327680]{0}', space=vmem, size = 0x50000, scoped, tag = 'input window, operand 1, single buffered']
    #allocation6 [shape = 's32[1]{0}', space=sflag, size = 0x4, scoped, tag = 'scoped memory for tpu_custom_call.1']
    #allocation7 [shape = 'u8[16384]{0}', space=vmem, size = 0x4000, scoped, tag = 'output window, operand 0, single buffered']
    %7 = vsyncpa [#allocation3], 0
    %8 = vsyncpa [#allocation6], 0
    %9 = vsyncpa [#allocation4], 0
    // Predicated region
    $region2: #{tpu_custom_call.1} parent=1 // pred_check
      _
    $region3: #{tpu_custom_call.1} parent=1 // pred_check_branch
      %11 = sbr.rel (0) target = $region5
    $region4: #{tpu_custom_call.1} parent=1 // pred_region
      %s13 = ssub.s32 128, 128
      %14 = vsyncadd [#allocation3], %s13
      %s15 = sshll.u32 [#allocation2], 4
      %s16 = int_to_ptr.vmem [resolvable:$true] %s15
      %21 = dma.hbm_to_vmem [thread:$0]  %s0, 128, %s16, [#allocation3], 64, 64, 4
    $region5: #{tpu_custom_call.1} parent=1 // pred_fallthru
      _
    // Predicated region
    $region6: #{tpu_custom_call.1} parent=1 // pred_check
      _
    $region7: #{tpu_custom_call.1} parent=1 // pred_check_branch
      %23 = sbr.rel (0) target = $region9
    $region8: #{tpu_custom_call.1} parent=1 // pred_region
      %s25 = ssub.s32 10240, 10240
      %26 = vsyncadd [#allocation6], %s25
      %s27 = sshll.u32 [#allocation5], 4
      %s28 = int_to_ptr.vmem [resolvable:$true] %s27
      %33 = dma.hbm_to_vmem [thread:$0]  %s1, 10240, %s28, [#allocation6], 128, 128, 8
    $region9: #{tpu_custom_call.1} parent=1 // pred_fallthru
      _
    // Predicated region
    $region10: #{tpu_custom_call.1} parent=1 // pred_check
      _
    $region11: #{tpu_custom_call.1} parent=1 // pred_check_branch
      %35 = sbr.rel (0) target = $region13
    $region12: #{tpu_custom_call.1} parent=1 // pred_region
      %36 = dma.done [#allocation3], 128
    $region13: #{tpu_custom_call.1} parent=1 // pred_fallthru
      _
    // Predicated region
    $region14: #{tpu_custom_call.1} parent=1 // pred_check
      _
    $region15: #{tpu_custom_call.1} parent=1 // pred_check_branch
      %38 = sbr.rel (0) target = $region17
    $region16: #{tpu_custom_call.1} parent=1 // pred_region
      %39 = dma.done [#allocation6], 10240
    $region17: #{tpu_custom_call.1} parent=1 // pred_fallthru
      _
    %v41 = vld [vmem:[#allocation2] sm:$0xf]
    %v42 = vld [vmem:[#allocation2 + $0x4] sm:$0xf]
    %v43 = vld [vmem:[#allocation5] sm:$0xff]
    %v44 = vld [vmem:[#allocation5 + $0x8] sm:$0xff]
    %v45 = vld [vmem:[#allocation5 + $0x10] sm:$0xff]
    %v46 = vld [vmem:[#allocation5 + $0x18] sm:$0xff]
    %v47 = vld [vmem:[#allocation5 + $0x20] sm:$0xff]
    %v48 = vld [vmem:[#allocation5 + $0x28] sm:$0xff]
    %v49 = vld [vmem:[#allocation5 + $0x30] sm:$0xff]
    %v50 = vld [vmem:[#allocation5 + $0x38] sm:$0xff]
    %v51 = vld [vmem:[#allocation5 + $0x40] sm:$0xff]
    %v52 = vld [vmem:[#allocation5 + $0x48] sm:$0xff]
    %v53 = vld [vmem:[#allocation5 + $0x50] sm:$0x11]
    %v54 = vunpack.c.l.bf16 %v53
    %v55 = vunpack.c.h.bf16 %v53
    %v56 = vlaneseq
    %v57 = vshrl.u32 %v56, 7
    %v58 = vsub.s32 0, %v57
    %v59 = vrot.slane %v54, %v58
    %v60 = vlaneseq
    %v61 = vshrl.u32 %v60, 7
    %v62 = vsub.s32 0, %v61
    %v63 = vrot.slane %v55, %v62
    %v66 = vunpack.c.l.b16 %v41
    %v67 = vunpack.c.l.b16 %v42
    %v68 = vpack.c.b16 %v67, %v66
    %v79 = vunpack.c.l.b16 %v43
    %v80 = vunpack.c.h.b16 %v43
    %v81 = vunpack.c.l.b16 %v44
    %v82 = vunpack.c.h.b16 %v44
    %v83 = vunpack.c.l.b16 %v45
    %v84 = vunpack.c.h.b16 %v45
    %v85 = vunpack.c.l.b16 %v46
    %v86 = vunpack.c.h.b16 %v46
    %v87 = vunpack.c.l.b16 %v47
    %v88 = vunpack.c.h.b16 %v47
    %v89 = vunpack.c.l.b16 %v48
    %v90 = vunpack.c.h.b16 %v48
    %v91 = vunpack.c.l.b16 %v49
    %v92 = vunpack.c.h.b16 %v49
    %v93 = vunpack.c.l.b16 %v50
    %v94 = vunpack.c.h.b16 %v50
    %v95 = vunpack.c.l.b16 %v51
    %v96 = vunpack.c.h.b16 %v51
    %v97 = vunpack.c.l.b16 %v52
    %v98 = vunpack.c.h.b16 %v52
    %v99 = vpack.c.b16 %v81, %v79
    %v100 = vpack.c.b16 %v82, %v80
    %v101 = vpack.c.b16 %v85, %v83
    %v102 = vpack.c.b16 %v86, %v84
    %v103 = vpack.c.b16 %v89, %v87
    %v104 = vpack.c.b16 %v90, %v88
    %v105 = vpack.c.b16 %v93, %v91
    %v106 = vpack.c.b16 %v94, %v92
    %v107 = vpack.c.b16 %v97, %v95
    %v108 = vpack.c.b16 %v98, %v96
    %vm119 = vcmask 654336
    %v121 = vsel %vm119, %v68, 0
    %123 = vmatprep.subr.bf16.mxu0 %v100
    %124 = vmatpush1.bf16.msra.mxu0 %v99
    %125 = vmatprep.subr.bf16.mxu0 %v102
    %126 = vmatpush1.bf16.msra.mxu0 %v101
    %127 = vmatprep.subr.bf16.mxu0 %v104
    %128 = vmatpush1.bf16.msra.mxu0 %v103
    %129 = vmatprep.subr.bf16.mxu0 %v106
    %130 = vmatpush1.bf16.msra.mxu0 %v105
    %131 = vmatprep.subr.bf16.mxu0 %v108
    %132 = vmatpush1.bf16.msra.mxu0 %v107
    %133 = vmatprep.subr.bf16.mxu0 0
    %134 = vmatpush1.bf16.msra.mxu0 0
    %135 = vmatprep.subr.bf16.mxu0 0
    %136 = vmatpush1.bf16.msra.mxu0 0
    %137 = vmatprep.subr.bf16.mxu0 0
    %138 = vmatpush1.bf16.msra.mxu0 0
    %139 = vmatprep.subr.bf16.mxu0 0
    %140 = vmatpush1.bf16.msra.mxu0 0
    %141 = vmatprep.subr.bf16.mxu0 0
    %142 = vmatpush1.bf16.msra.mxu0 0
    %143 = vmatprep.subr.bf16.mxu0 0
    %144 = vmatpush1.bf16.msra.mxu0 0
    %145 = vmatprep.subr.bf16.mxu0 0
    %146 = vmatpush1.bf16.msra.mxu0 0
    %147 = vmatprep.subr.bf16.mxu0 0
    %148 = vmatpush1.bf16.msra.mxu0 0
    %149 = vmatprep.subr.bf16.mxu0 0
    %150 = vmatpush1.bf16.msra.mxu0 0
    %151 = vmatprep.subr.bf16.mxu0 0
    %152 = vmatpush1.bf16.msra.mxu0 0
    %153 = vmatprep.subr.bf16.mxu0 0
    %154 = vmatpush1.bf16.msra.mxu0 0
    %155 = vmatprep.mubr.bf16.mxu0 0
    %156 = vmatmul.mubr.bf16.gmra.mrb[0].mxu0 %v121
    %v157 = vpop.f32.mrb[0].mxu0
    %v158 = vadd.f32 %v59, %v157
    %v159 = vpop.f32.mrb[0].mxu0
    %v160 = vadd.f32 %v63, %v159
    %v161 = vpop.f32.mrb[0].mxu0
    %v162 = vadd.f32 %v59, %v161
    %v163 = vpop.f32.mrb[0].mxu0
    %v164 = vadd.f32 %v63, %v163
    %165 = vdwg.mxu0
    %v166 = vtanh.pop %v158
    %v167 = vtanh.pop %v160
    %v168 = vtanh.pop %v162
    %v169 = vtanh.pop %v164
    %v170 = vpack.c.bf16 %v168, %v166
    %v171 = vpack.c.bf16 %v169, %v167
    %v172 = vld [vmem:[#allocation5 + $0x60] sm:$0xff]
    %v173 = vld [vmem:[#allocation5 + $0x68] sm:$0xff]
    %v174 = vld [vmem:[#allocation5 + $0x70] sm:$0xff]
    %v175 = vld [vmem:[#allocation5 + $0x78] sm:$0xff]
    %v176 = vld [vmem:[#allocation5 + $0x80] sm:$0xff]
    %v177 = vld [vmem:[#allocation5 + $0x88] sm:$0xff]
    %v178 = vld [vmem:[#allocation5 + $0x90] sm:$0xff]
    %v179 = vld [vmem:[#allocation5 + $0x98] sm:$0xff]
    %v180 = vld [vmem:[#allocation5 + $0xa0] sm:$0xff]
    %v181 = vld [vmem:[#allocation5 + $0xa8] sm:$0xff]
    %v182 = vld [vmem:[#allocation5 + $0xb0] sm:$0xff]
    %v183 = vld [vmem:[#allocation5 + $0xb8] sm:$0xff]
    %v184 = vld [vmem:[#allocation5 + $0xc0] sm:$0xff]
    %v185 = vld [vmem:[#allocation5 + $0xc8] sm:$0xff]
    %v186 = vld [vmem:[#allocation5 + $0xd0] sm:$0xff]
    %v187 = vld [vmem:[#allocation5 + $0xd8] sm:$0xff]
    %v188 = vld [vmem:[#allocation5 + $0xe0] sm:$0xff]
    %v189 = vld [vmem:[#allocation5 + $0xe8] sm:$0xff]
    %v190 = vld [vmem:[#allocation5 + $0xf0] sm:$0xff]
    %v191 = vld [vmem:[#allocation5 + $0xf8] sm:$0xff]
    %v192 = vld [vmem:[#allocation5 + $0x100] sm:$0xff]
    %v193 = vld [vmem:[#allocation5 + $0x108] sm:$0xff]
    %v194 = vld [vmem:[#allocation5 + $0x110] sm:$0xff]
    %v195 = vld [vmem:[#allocation5 + $0x118] sm:$0xff]
    %v196 = vld [vmem:[#allocation5 + $0x120] sm:$0xff]
    %v197 = vld [vmem:[#allocation5 + $0x128] sm:$0xff]
    %v198 = vld [vmem:[#allocation5 + $0x130] sm:$0xff]
    %v199 = vld [vmem:[#allocation5 + $0x138] sm:$0xff]
    %v200 = vld [vmem:[#allocation5 + $0x140] sm:$0xff]
    %v201 = vld [vmem:[#allocation5 + $0x148] sm:$0xff]
    %v202 = vld [vmem:[#allocation5 + $0x150] sm:$0xff]
    %v203 = vld [vmem:[#allocation5 + $0x158] sm:$0xff]
    %v204 = vld [vmem:[#allocation5 + $0x160] sm:$0x11]
    %v205 = vunpack.c.l.bf16 %v204
    %v206 = vunpack.c.h.bf16 %v204
    %v207 = vlaneseq
    %v208 = vshrl.u32 %v207, 7
    %v209 = vsub.s32 0, %v208
    %v210 = vrot.slane %v205, %v209
    %v211 = vlaneseq
    %v212 = vshrl.u32 %v211, 7
    %v213 = vsub.s32 0, %v212
    %v214 = vrot.slane %v206, %v213
    %v247 = vunpack.c.l.b16 %v172
    %v248 = vunpack.c.h.b16 %v172
    %v249 = vunpack.c.l.b16 %v173
    %v250 = vunpack.c.h.b16 %v173
    %v251 = vunpack.c.l.b16 %v174
    %v252 = vunpack.c.h.b16 %v174
    %v253 = vunpack.c.l.b16 %v175
    %v254 = vunpack.c.h.b16 %v175
    %v255 = vunpack.c.l.b16 %v176
    %v256 = vunpack.c.h.b16 %v176
    %v257 = vunpack.c.l.b16 %v177
    %v258 = vunpack.c.h.b16 %v177
    %v259 = vunpack.c.l.b16 %v178
    %v260 = vunpack.c.h.b16 %v178
    %v261 = vunpack.c.l.b16 %v179
    %v262 = vunpack.c.h.b16 %v179
    %v263 = vunpack.c.l.b16 %v180
    %v264 = vunpack.c.h.b16 %v180
    %v265 = vunpack.c.l.b16 %v181
    %v266 = vunpack.c.h.b16 %v181
    %v267 = vunpack.c.l.b16 %v182
    %v268 = vunpack.c.h.b16 %v182
    %v269 = vunpack.c.l.b16 %v183
    %v270 = vunpack.c.h.b16 %v183
    %v271 = vunpack.c.l.b16 %v184
    %v272 = vunpack.c.h.b16 %v184
    %v273 = vunpack.c.l.b16 %v185
    %v274 = vunpack.c.h.b16 %v185
    %v275 = vunpack.c.l.b16 %v186
    %v276 = vunpack.c.h.b16 %v186
    %v277 = vunpack.c.l.b16 %v187
    %v278 = vunpack.c.h.b16 %v187
    %v279 = vunpack.c.l.b16 %v188
    %v280 = vunpack.c.h.b16 %v188
    %v281 = vunpack.c.l.b16 %v189
    %v282 = vunpack.c.h.b16 %v189
    %v283 = vunpack.c.l.b16 %v190
    %v284 = vunpack.c.h.b16 %v190
    %v285 = vunpack.c.l.b16 %v191
    %v286 = vunpack.c.h.b16 %v191
    %v287 = vunpack.c.l.b16 %v192
    %v288 = vunpack.c.h.b16 %v192
    %v289 = vunpack.c.l.b16 %v193
    %v290 = vunpack.c.h.b16 %v193
    %v291 = vunpack.c.l.b16 %v194
    %v292 = vunpack.c.h.b16 %v194
    %v293 = vunpack.c.l.b16 %v195
    %v294 = vunpack.c.h.b16 %v195
    %v295 = vunpack.c.l.b16 %v196
    %v296 = vunpack.c.h.b16 %v196
    %v297 = vunpack.c.l.b16 %v197
    %v298 = vunpack.c.h.b16 %v197
    %v299 = vunpack.c.l.b16 %v198
    %v300 = vunpack.c.h.b16 %v198
    %v301 = vunpack.c.l.b16 %v199
    %v302 = vunpack.c.h.b16 %v199
    %v303 = vunpack.c.l.b16 %v200
    %v304 = vunpack.c.h.b16 %v200
    %v305 = vunpack.c.l.b16 %v201
    %v306 = vunpack.c.h.b16 %v201
    %v307 = vunpack.c.l.b16 %v202
    %v308 = vunpack.c.h.b16 %v202
    %v309 = vunpack.c.l.b16 %v203
    %v310 = vunpack.c.h.b16 %v203
    %v311 = vpack.c.b16 %v249, %v247
    %v312 = vpack.c.b16 %v250, %v248
    %v313 = vpack.c.b16 %v253, %v251
    %v314 = vpack.c.b16 %v254, %v252
    %v315 = vpack.c.b16 %v257, %v255
    %v316 = vpack.c.b16 %v258, %v256
    %v317 = vpack.c.b16 %v261, %v259
    %v318 = vpack.c.b16 %v262, %v260
    %v319 = vpack.c.b16 %v265, %v263
    %v320 = vpack.c.b16 %v266, %v264
    %v321 = vpack.c.b16 %v269, %v267
    %v322 = vpack.c.b16 %v270, %v268
    %v323 = vpack.c.b16 %v273, %v271
    %v324 = vpack.c.b16 %v274, %v272
    %v325 = vpack.c.b16 %v277, %v275
    %v326 = vpack.c.b16 %v278, %v276
    %v327 = vpack.c.b16 %v281, %v279
    %v328 = vpack.c.b16 %v282, %v280
    %v329 = vpack.c.b16 %v285, %v283
    %v330 = vpack.c.b16 %v286, %v284
    %v331 = vpack.c.b16 %v289, %v287
    %v332 = vpack.c.b16 %v290, %v288
    %v333 = vpack.c.b16 %v293, %v291
    %v334 = vpack.c.b16 %v294, %v292
    %v335 = vpack.c.b16 %v297, %v295
    %v336 = vpack.c.b16 %v298, %v296
    %v337 = vpack.c.b16 %v301, %v299
    %v338 = vpack.c.b16 %v302, %v300
    %v339 = vpack.c.b16 %v305, %v303
    %v340 = vpack.c.b16 %v306, %v304
    %v341 = vpack.c.b16 %v309, %v307
    %v342 = vpack.c.b16 %v310, %v308
    %375 = vmatprep.subr.bf16.mxu0 %v312
    %376 = vmatpush1.bf16.msra.mxu0 %v311
    %377 = vmatprep.subr.bf16.mxu0 %v314
    %378 = vmatpush1.bf16.msra.mxu0 %v313
    %379 = vmatprep.subr.bf16.mxu0 %v316
    %380 = vmatpush1.bf16.msra.mxu0 %v315
    %381 = vmatprep.subr.bf16.mxu0 %v318
    %382 = vmatpush1.bf16.msra.mxu0 %v317
    %383 = vmatprep.subr.bf16.mxu0 %v320
    %384 = vmatpush1.bf16.msra.mxu0 %v319
    %385 = vmatprep.subr.bf16.mxu0 %v322
    %386 = vmatpush1.bf16.msra.mxu0 %v321
    %387 = vmatprep.subr.bf16.mxu0 %v324
    %388 = vmatpush1.bf16.msra.mxu0 %v323
    %389 = vmatprep.subr.bf16.mxu0 %v326
    %390 = vmatpush1.bf16.msra.mxu0 %v325
    %391 = vmatprep.subr.bf16.mxu0 %v328
    %392 = vmatpush1.bf16.msra.mxu0 %v327
    %393 = vmatprep.subr.bf16.mxu0 %v330
    %394 = vmatpush1.bf16.msra.mxu0 %v329
    %395 = vmatprep.subr.bf16.mxu0 %v332
    %396 = vmatpush1.bf16.msra.mxu0 %v331
    %397 = vmatprep.subr.bf16.mxu0 %v334
    %398 = vmatpush1.bf16.msra.mxu0 %v333
    %399 = vmatprep.subr.bf16.mxu0 %v336
    %400 = vmatpush1.bf16.msra.mxu0 %v335
    %401 = vmatprep.subr.bf16.mxu0 %v338
    %402 = vmatpush1.bf16.msra.mxu0 %v337
    %403 = vmatprep.subr.bf16.mxu0 %v340
    %404 = vmatpush1.bf16.msra.mxu0 %v339
    %405 = vmatprep.subr.bf16.mxu0 %v342
    %406 = vmatpush1.bf16.msra.mxu0 %v341
    %407 = vmatprep.mubr.bf16.mxu0 %v171
    %408 = vmatmul.mubr.bf16.gmra.mrb[0].mxu0 %v170
    %v409 = vpop.f32.mrb[0].mxu0
    %v410 = vadd.f32 %v210, %v409
    %v411 = vpop.f32.mrb[0].mxu0
    %v412 = vadd.f32 %v214, %v411
    %v413 = vpop.f32.mrb[0].mxu0
    %v414 = vadd.f32 %v210, %v413
    %v415 = vpop.f32.mrb[0].mxu0
    %v416 = vadd.f32 %v214, %v415
    %417 = vdwg.mxu0
    %v418 = vtanh.pop %v410
    %v419 = vtanh.pop %v412
    %v420 = vtanh.pop %v414
    %v421 = vtanh.pop %v416
    %v422 = vpack.c.bf16 %v420, %v418
    %v423 = vpack.c.bf16 %v421, %v419
    %v424 = vld [vmem:[#allocation5 + $0x170] sm:$0xff]
    %v425 = vld [vmem:[#allocation5 + $0x178] sm:$0xff]
    %v426 = vld [vmem:[#allocation5 + $0x180] sm:$0xff]
    %v427 = vld [vmem:[#allocation5 + $0x188] sm:$0xff]
    %v428 = vld [vmem:[#allocation5 + $0x190] sm:$0xff]
    %v429 = vld [vmem:[#allocation5 + $0x198] sm:$0xff]
    %v430 = vld [vmem:[#allocation5 + $0x1a0] sm:$0xff]
    %v431 = vld [vmem:[#allocation5 + $0x1a8] sm:$0xff]
    %v432 = vld [vmem:[#allocation5 + $0x1b0] sm:$0xff]
    %v433 = vld [vmem:[#allocation5 + $0x1b8] sm:$0xff]
    %v434 = vld [vmem:[#allocation5 + $0x1c0] sm:$0xff]
    %v435 = vld [vmem:[#allocation5 + $0x1c8] sm:$0xff]
    %v436 = vld [vmem:[#allocation5 + $0x1d0] sm:$0xff]
    %v437 = vld [vmem:[#allocation5 + $0x1d8] sm:$0xff]
    %v438 = vld [vmem:[#allocation5 + $0x1e0] sm:$0xff]
    %v439 = vld [vmem:[#allocation5 + $0x1e8] sm:$0xff]
    %v440 = vld [vmem:[#allocation5 + $0x1f0] sm:$0xff]
    %v441 = vld [vmem:[#allocation5 + $0x1f8] sm:$0xff]
    %v442 = vld [vmem:[#allocation5 + $0x200] sm:$0xff]
    %v443 = vld [vmem:[#allocation5 + $0x208] sm:$0xff]
    %v444 = vld [vmem:[#allocation5 + $0x210] sm:$0xff]
    %v445 = vld [vmem:[#allocation5 + $0x218] sm:$0xff]
    %v446 = vld [vmem:[#allocation5 + $0x220] sm:$0xff]
    %v447 = vld [vmem:[#allocation5 + $0x228] sm:$0xff]
    %v448 = vld [vmem:[#allocation5 + $0x230] sm:$0xff]
    %v449 = vld [vmem:[#allocation5 + $0x238] sm:$0xff]
    %v450 = vld [vmem:[#allocation5 + $0x240] sm:$0xff]
    %v451 = vld [vmem:[#allocation5 + $0x248] sm:$0xff]
    %v452 = vld [vmem:[#allocation5 + $0x250] sm:$0xff]
    %v453 = vld [vmem:[#allocation5 + $0x258] sm:$0xff]
    %v454 = vld [vmem:[#allocation5 + $0x260] sm:$0xff]
    %v455 = vld [vmem:[#allocation5 + $0x268] sm:$0xff]
    %v456 = vld [vmem:[#allocation5 + $0x270] sm:$0x11]
    %v457 = vunpack.c.l.bf16 %v456
    %v458 = vunpack.c.h.bf16 %v456
    %v459 = vlaneseq
    %v460 = vshrl.u32 %v459, 7
    %v461 = vsub.s32 0, %v460
    %v462 = vrot.slane %v457, %v461
    %v463 = vlaneseq
    %v464 = vshrl.u32 %v463, 7
    %v465 = vsub.s32 0, %v464
    %v466 = vrot.slane %v458, %v465
    %v499 = vunpack.c.l.b16 %v424
    %v500 = vunpack.c.h.b16 %v424
    %v501 = vunpack.c.l.b16 %v425
    %v502 = vunpack.c.h.b16 %v425
    %v503 = vunpack.c.l.b16 %v426
    %v504 = vunpack.c.h.b16 %v426
    %v505 = vunpack.c.l.b16 %v427
    %v506 = vunpack.c.h.b16 %v427
    %v507 = vunpack.c.l.b16 %v428
    %v508 = vunpack.c.h.b16 %v428
    %v509 = vunpack.c.l.b16 %v429
    %v510 = vunpack.c.h.b16 %v429
    %v511 = vunpack.c.l.b16 %v430
    %v512 = vunpack.c.h.b16 %v430
    %v513 = vunpack.c.l.b16 %v431
    %v514 = vunpack.c.h.b16 %v431
    %v515 = vunpack.c.l.b16 %v432
    %v516 = vunpack.c.h.b16 %v432
    %v517 = vunpack.c.l.b16 %v433
    %v518 = vunpack.c.h.b16 %v433
    %v519 = vunpack.c.l.b16 %v434
    %v520 = vunpack.c.h.b16 %v434
    %v521 = vunpack.c.l.b16 %v435
    %v522 = vunpack.c.h.b16 %v435
    %v523 = vunpack.c.l.b16 %v436
    %v524 = vunpack.c.h.b16 %v436
    %v525 = vunpack.c.l.b16 %v437
    %v526 = vunpack.c.h.b16 %v437
    %v527 = vunpack.c.l.b16 %v438
    %v528 = vunpack.c.h.b16 %v438
    %v529 = vunpack.c.l.b16 %v439
    %v530 = vunpack.c.h.b16 %v439
    %v531 = vunpack.c.l.b16 %v440
    %v532 = vunpack.c.h.b16 %v440
    %v533 = vunpack.c.l.b16 %v441
    %v534 = vunpack.c.h.b16 %v441
    %v535 = vunpack.c.l.b16 %v442
    %v536 = vunpack.c.h.b16 %v442
    %v537 = vunpack.c.l.b16 %v443
    %v538 = vunpack.c.h.b16 %v443
    %v539 = vunpack.c.l.b16 %v444
    %v540 = vunpack.c.h.b16 %v444
    %v541 = vunpack.c.l.b16 %v445
    %v542 = vunpack.c.h.b16 %v445
    %v543 = vunpack.c.l.b16 %v446
    %v544 = vunpack.c.h.b16 %v446
    %v545 = vunpack.c.l.b16 %v447
    %v546 = vunpack.c.h.b16 %v447
    %v547 = vunpack.c.l.b16 %v448
    %v548 = vunpack.c.h.b16 %v448
    %v549 = vunpack.c.l.b16 %v449
    %v550 = vunpack.c.h.b16 %v449
    %v551 = vunpack.c.l.b16 %v450
    %v552 = vunpack.c.h.b16 %v450
    %v553 = vunpack.c.l.b16 %v451
    %v554 = vunpack.c.h.b16 %v451
    %v555 = vunpack.c.l.b16 %v452
    %v556 = vunpack.c.h.b16 %v452
    %v557 = vunpack.c.l.b16 %v453
    %v558 = vunpack.c.h.b16 %v453
    %v559 = vunpack.c.l.b16 %v454
    %v560 = vunpack.c.h.b16 %v454
    %v561 = vunpack.c.l.b16 %v455
    %v562 = vunpack.c.h.b16 %v455
    %v563 = vpack.c.b16 %v501, %v499
    %v564 = vpack.c.b16 %v502, %v500
    %v565 = vpack.c.b16 %v505, %v503
    %v566 = vpack.c.b16 %v506, %v504
    %v567 = vpack.c.b16 %v509, %v507
    %v568 = vpack.c.b16 %v510, %v508
    %v569 = vpack.c.b16 %v513, %v511
    %v570 = vpack.c.b16 %v514, %v512
    %v571 = vpack.c.b16 %v517, %v515
    %v572 = vpack.c.b16 %v518, %v516
    %v573 = vpack.c.b16 %v521, %v519
    %v574 = vpack.c.b16 %v522, %v520
    %v575 = vpack.c.b16 %v525, %v523
    %v576 = vpack.c.b16 %v526, %v524
    %v577 = vpack.c.b16 %v529, %v527
    %v578 = vpack.c.b16 %v530, %v528
    %v579 = vpack.c.b16 %v533, %v531
    %v580 = vpack.c.b16 %v534, %v532
    %v581 = vpack.c.b16 %v537, %v535
    %v582 = vpack.c.b16 %v538, %v536
    %v583 = vpack.c.b16 %v541, %v539
    %v584 = vpack.c.b16 %v542, %v540
    %v585 = vpack.c.b16 %v545, %v543
    %v586 = vpack.c.b16 %v546, %v544
    %v587 = vpack.c.b16 %v549, %v547
    %v588 = vpack.c.b16 %v550, %v548
    %v589 = vpack.c.b16 %v553, %v551
    %v590 = vpack.c.b16 %v554, %v552
    %v591 = vpack.c.b16 %v557, %v555
    %v592 = vpack.c.b16 %v558, %v556
    %v593 = vpack.c.b16 %v561, %v559
    %v594 = vpack.c.b16 %v562, %v560
    %627 = vmatprep.subr.bf16.mxu0 %v564
    %628 = vmatpush1.bf16.msra.mxu0 %v563
    %629 = vmatprep.subr.bf16.mxu0 %v566
    %630 = vmatpush1.bf16.msra.mxu0 %v565
    %631 = vmatprep.subr.bf16.mxu0 %v568
    %632 = vmatpush1.bf16.msra.mxu0 %v567
    %633 = vmatprep.subr.bf16.mxu0 %v570
    %634 = vmatpush1.bf16.msra.mxu0 %v569
    %635 = vmatprep.subr.bf16.mxu0 %v572
    %636 = vmatpush1.bf16.msra.mxu0 %v571
    %637 = vmatprep.subr.bf16.mxu0 %v574
    %638 = vmatpush1.bf16.msra.mxu0 %v573
    %639 = vmatprep.subr.bf16.mxu0 %v576
    %640 = vmatpush1.bf16.msra.mxu0 %v575
    %641 = vmatprep.subr.bf16.mxu0 %v578
    %642 = vmatpush1.bf16.msra.mxu0 %v577
    %643 = vmatprep.subr.bf16.mxu0 %v580
    %644 = vmatpush1.bf16.msra.mxu0 %v579
    %645 = vmatprep.subr.bf16.mxu0 %v582
    %646 = vmatpush1.bf16.msra.mxu0 %v581
    %647 = vmatprep.subr.bf16.mxu0 %v584
    %648 = vmatpush1.bf16.msra.mxu0 %v583
    %649 = vmatprep.subr.bf16.mxu0 %v586
    %650 = vmatpush1.bf16.msra.mxu0 %v585
    %651 = vmatprep.subr.bf16.mxu0 %v588
    %652 = vmatpush1.bf16.msra.mxu0 %v587
    %653 = vmatprep.subr.bf16.mxu0 %v590
    %654 = vmatpush1.bf16.msra.mxu0 %v589
    %655 = vmatprep.subr.bf16.mxu0 %v592
    %656 = vmatpush1.bf16.msra.mxu0 %v591
    %657 = vmatprep.subr.bf16.mxu0 %v594
    %658 = vmatpush1.bf16.msra.mxu0 %v593
    %659 = vmatprep.mubr.bf16.mxu0 %v423
    %660 = vmatmul.mubr.bf16.gmra.mrb[0].mxu0 %v422
    %v661 = vpop.f32.mrb[0].mxu0
    %v662 = vadd.f32 %v462, %v661
    %v663 = vpop.f32.mrb[0].mxu0
    %v664 = vadd.f32 %v466, %v663
    %v665 = vpop.f32.mrb[0].mxu0
    %v666 = vadd.f32 %v462, %v665
    %v667 = vpop.f32.mrb[0].mxu0
    %v668 = vadd.f32 %v466, %v667
    %669 = vdwg.mxu0
    %670 = vst [vmem:[#allocation7] sm:$0xff] %v662
    %671 = vst [vmem:[#allocation7 + $0x8] sm:$0xff] %v664
    %672 = vst [vmem:[#allocation7 + $0x10] sm:$0xff] %v666
    %673 = vst [vmem:[#allocation7 + $0x18] sm:$0xff] %v668
    // Predicated region
    $region18: #{tpu_custom_call.1} parent=1 // pred_check
      _
    $region19: #{tpu_custom_call.1} parent=1 // pred_check_branch
      %675 = sbr.rel (0) target = $region21
    $region20: #{tpu_custom_call.1} parent=1 // pred_region
      %s677 = ssub.s32 512, 512
      %678 = vsyncadd [#allocation4], %s677
      %s679 = sshll.u32 [#allocation7], 4
      %s680 = int_to_ptr.vmem [resolvable:$true] %s679
      %685 = dma.vmem_to_hbm [thread:$0]  %s680, 512, %s2, [#allocation4], 256, 256, 16
    $region21: #{tpu_custom_call.1} parent=1 // pred_fallthru
      _
    // Predicated region
    $region22: #{tpu_custom_call.1} parent=1 // pred_check
      _
    $region23: #{tpu_custom_call.1} parent=1 // pred_check_branch
      %687 = sbr.rel (0) target = $region25
    $region24: #{tpu_custom_call.1} parent=1 // pred_region
      %688 = dma.done [#allocation4], 512
    $region25: #{tpu_custom_call.1} parent=1 // pred_fallthru
      _
    %689 = vsyncpa [#allocation3], 1
    %690 = vsyncpa [#allocation6], 1
    %691 = vsyncpa [#allocation4], 1

</llo_original>
